<compile_context>
chip_gen: v7x
topology: tpu7x:2x2x1
jax: 0.10.0
libtpu: 0.0.40
codegen_flags: <defaults>
</compile_context>

<pallas_src>
import functools
import math

import jax
import jax.numpy as jnp
from jax.experimental import pallas as pl
from jax.experimental.pallas import tpu as pltpu

_LANE = 128
_SUBLANE = 8


def _round_up(n, m):
    return ((n + m - 1) // m) * m


def _make_fused_mlp_kernel(num_hidden):
    """Builds the fused kernel for `num_hidden` ReLU layers + 1 sigmoid layer."""

    def kernel(*refs):
        # refs = (x, [w_i, b_i] * num_hidden, w_last, b_last, out)
        x_ref = refs[0]
        o_ref = refs[-1]

        h = x_ref[...]                                   # (B_pad, 128k) f32
        idx = 1
        for _ in range(num_hidden):
            w = refs[idx][...]                           # (K_pad, N_pad)
            b = refs[idx + 1][...]                       # (1, N_pad) — broadcasts
            idx += 2
            h = jnp.dot(h, w, preferred_element_type=jnp.float32) + b
            h = jnp.maximum(h, 0.0)                      # ReLU on the VPU

        # Final layer (out_features == 1): VPU multiply + XLU lane reduction,
        # avoids an MXU matmul that would use 1/128 of the columns.
        w_last = refs[idx][...]                          # (1, K_pad) row vector
        b_last = refs[idx + 1][...]                      # (1, 1)
        logits = jnp.sum(h * w_last, axis=-1, keepdims=True) + b_last

        # Sigmoid kept on the (otherwise idle) EUP slot.
        y = pl.reciprocal(1.0 + jnp.exp(-logits), approx=True)
        y = jnp.minimum(jnp.maximum(y, 0.0), 1.0)        # guard approx overshoot

        # Lane-dense output slab; the wrapper slices column 0.
        o_ref[...] = jnp.broadcast_to(y, o_ref.shape).astype(o_ref.dtype)

    return kernel


@functools.partial(jax.jit, static_argnames=("num_hidden", "n_inputs"))
def pytorch_nn_forward(x, flat_params, num_hidden, n_inputs):
    """x: (B, n_inputs) f32, flat_params: tuple of padded arrays -> (B, 1) f32."""
    B = x.shape[0]
    B_pad = _round_up(max(B, 1), _SUBLANE)
    K_pad = _round_up(n_inputs, _LANE)

    x_pad = jnp.zeros((B_pad, K_pad), jnp.float32).at[:B, :n_inputs].set(
        x.astype(jnp.float32))

    in_specs = [pl.BlockSpec(x_pad.shape, lambda: (0, 0))]
    for p in flat_params:
        in_specs.append(pl.BlockSpec(p.shape, lambda: (0, 0)))
    out_specs = pl.BlockSpec((B_pad, _LANE), lambda: (0, 0))

    # Advisory cost estimate for XLA's scheduler.
    flops = 0
    for i in range(num_hidden):
        w = flat_params[2 * i]
        flops += 2 * B_pad * w.shape[0] * w.shape[1]
    flops += 2 * B_pad * flat_params[2 * num_hidden].shape[1]
    bytes_accessed = (x_pad.size + sum(p.size for p in flat_params)
                      + B_pad * _LANE) * 4
    cost = pl.CostEstimate(flops=flops, transcendentals=B_pad,
                           bytes_accessed=bytes_accessed)

    out_pad = pl.pallas_call(
        _make_fused_mlp_kernel(num_hidden),
        out_shape=jax.ShapeDtypeStruct((B_pad, _LANE), jnp.float32),
        in_specs=in_specs,
        out_specs=out_specs,
        cost_estimate=cost,
        compiler_params=pltpu.CompilerParams(vmem_limit_bytes=32 * 1024 * 1024),
    )(x_pad, *flat_params)

    return out_pad[:B, :1]


def init_params(key, n_layers, n_inputs, n_hidden_units):
    """PyTorch-default-style init (uniform +-1/sqrt(fan_in)), pre-padded for TPU.

    Returns (flat_params, num_hidden): flat_params is a tuple of arrays only
    (activation structure is static and baked into the kernel).
    """
    dims = []
    if n_layers == 1:
        dims.append((n_inputs, 1))
    else:
        dims.append((n_inputs, n_hidden_units[0]))
        for i in range(1, len(n_hidden_units)):
            dims.append((n_hidden_units[i - 1], n_hidden_units[i]))
        dims.append((n_hidden_units[-1], 1))

    num_hidden = len(dims) - 1  # all but the final sigmoid layer use ReLU
    flat = []
    for li, (fan_in, fan_out) in enumerate(dims):
        key, kw, kb = jax.random.split(key, 3)
        bound = 1.0 / math.sqrt(fan_in)
        w = jax.random.uniform(kw, (fan_in, fan_out), jnp.float32, -bound, bound)
        b = jax.random.uniform(kb, (fan_out,), jnp.float32, -bound, bound)
        if li < num_hidden:
            k_pad = _round_up(fan_in, _LANE)
            n_pad = _round_up(fan_out, _LANE)
            w_pad = jnp.zeros((k_pad, n_pad), jnp.float32).at[:fan_in, :fan_out].set(w)
            b_pad = jnp.zeros((1, n_pad), jnp.float32).at[0, :fan_out].set(b)
            flat += [w_pad, b_pad]
        else:
            # Final (fan_in -> 1) layer stored as a lane row vector for the
            # VPU-multiply + lane-reduce path.
            k_pad = _round_up(fan_in, _LANE)
            w_row = jnp.zeros((1, k_pad), jnp.float32).at[0, :fan_in].set(w[:, 0])
            b_sc = b.reshape(1, 1).astype(jnp.float32)
            flat += [w_row, b_sc]
    return tuple(flat), num_hidden


def _reference_forward(x, flat_params, num_hidden, n_inputs):
    """Plain-JAX reference of the same padded MLP (exact sigmoid)."""
    B = x.shape[0]
    K_pad = flat_params[0].shape[0] if num_hidden > 0 else flat_params[0].shape[1]
    h = jnp.zeros((B, K_pad), jnp.float32).at[:, :n_inputs].set(x)
    idx = 0
    for _ in range(num_hidden):
        h = jnp.maximum(h @ flat_params[idx] + flat_params[idx + 1], 0.0)
        idx += 2
    logits = jnp.sum(h * flat_params[idx], axis=-1, keepdims=True) + flat_params[idx + 1]
    return jax.nn.sigmoid(logits)


if __name__ == "__main__":
    # Small config consistent with the module: n_layers=3, hidden units [64, 32].
    n_layers = 3
    n_inputs = 32
    n_hidden_units = [64, 32]
    batch = 8

    key = jax.random.PRNGKey(0)
    key, kx = jax.random.split(key)
    x = jax.random.normal(kx, (batch, n_inputs), jnp.float32)

    flat_params, num_hidden = init_params(key, n_layers, n_inputs, n_hidden_units)

    out = pytorch_nn_forward(x, flat_params, num_hidden, n_inputs)
    out = jax.block_until_ready(out)

    assert out.shape == (batch, 1), out.shape
    assert out.dtype == jnp.float32
    assert bool(jnp.all((out >= 0.0) & (out <= 1.0)))

    ref = _reference_forward(x, flat_params, num_hidden, n_inputs)
    assert bool(jnp.allclose(out, ref, atol=2e-3, rtol=2e-3)), (
        float(jnp.max(jnp.abs(out - ref))))
    print("KERNEL_OK")
</pallas_src>

<mosaic_0001>
module attributes {stable_mosaic.version = 11 : i64} {
  func.func @kernel(%arg0: memref<8x128xf32, #tpu.memory_space<vmem>>, %arg1: memref<128x128xf32, #tpu.memory_space<vmem>>, %arg2: memref<1x128xf32, #tpu.memory_space<vmem>>, %arg3: memref<128x128xf32, #tpu.memory_space<vmem>>, %arg4: memref<1x128xf32, #tpu.memory_space<vmem>>, %arg5: memref<1x128xf32, #tpu.memory_space<vmem>>, %arg6: memref<1x1xf32, #tpu.memory_space<vmem>>, %arg7: memref<8x128xf32, #tpu.memory_space<vmem>>) attributes {dimension_semantics = [], scalar_prefetch = 0 : i64, scratch_operands = 0 : i64, tpu.core_type = #tpu.core_type<tc>} {
    %c0 = arith.constant 0 : index
    %c0_0 = arith.constant 0 : index
    %0 = vector.load %arg0[%c0, %c0_0] : memref<8x128xf32, #tpu.memory_space<vmem>>, vector<8x128xf32>
    %c0_1 = arith.constant 0 : index
    %c0_2 = arith.constant 0 : index
    %1 = vector.load %arg1[%c0_1, %c0_2] : memref<128x128xf32, #tpu.memory_space<vmem>>, vector<128x128xf32>
    %c0_3 = arith.constant 0 : index
    %c0_4 = arith.constant 0 : index
    %2 = vector.load %arg2[%c0_3, %c0_4] : memref<1x128xf32, #tpu.memory_space<vmem>>, vector<1x128xf32>
    %cst = arith.constant dense<0.000000e+00> : vector<8x128xf32>
    %3 = tpu.matmul %0, %1, %cst {dimension_numbers = #tpu.dot_dimension_numbers<[1], [0], [0], [1], [0, 0, 1, 1], [], []>} : vector<8x128xf32>, vector<128x128xf32>, vector<8x128xf32> -> vector<8x128xf32>
    %4 = vector.broadcast %2 : vector<1x128xf32> to vector<8x128xf32>
    %5 = arith.addf %3, %4 : vector<8x128xf32>
    %cst_5 = arith.constant 0.000000e+00 : f32
    %6 = vector.broadcast %cst_5 : f32 to vector<8x128xf32>
    %7 = arith.maximumf %5, %6 : vector<8x128xf32>
    %c0_6 = arith.constant 0 : index
    %c0_7 = arith.constant 0 : index
    %8 = vector.load %arg3[%c0_6, %c0_7] : memref<128x128xf32, #tpu.memory_space<vmem>>, vector<128x128xf32>
    %c0_8 = arith.constant 0 : index
    %c0_9 = arith.constant 0 : index
    %9 = vector.load %arg4[%c0_8, %c0_9] : memref<1x128xf32, #tpu.memory_space<vmem>>, vector<1x128xf32>
    %cst_10 = arith.constant dense<0.000000e+00> : vector<8x128xf32>
    %10 = tpu.matmul %7, %8, %cst_10 {dimension_numbers = #tpu.dot_dimension_numbers<[1], [0], [0], [1], [0, 0, 1, 1], [], []>} : vector<8x128xf32>, vector<128x128xf32>, vector<8x128xf32> -> vector<8x128xf32>
    %11 = vector.broadcast %9 : vector<1x128xf32> to vector<8x128xf32>
    %12 = arith.addf %10, %11 : vector<8x128xf32>
    %cst_11 = arith.constant 0.000000e+00 : f32
    %13 = vector.broadcast %cst_11 : f32 to vector<8x128xf32>
    %14 = arith.maximumf %12, %13 : vector<8x128xf32>
    %c0_12 = arith.constant 0 : index
    %c0_13 = arith.constant 0 : index
    %15 = vector.load %arg5[%c0_12, %c0_13] : memref<1x128xf32, #tpu.memory_space<vmem>>, vector<1x128xf32>
    %c0_14 = arith.constant 0 : index
    %c0_15 = arith.constant 0 : index
    %16 = vector.load %arg6[%c0_14, %c0_15] : memref<1x1xf32, #tpu.memory_space<vmem>>, vector<1x1xf32>
    %17 = vector.broadcast %15 : vector<1x128xf32> to vector<8x128xf32>
    %18 = arith.mulf %14, %17 : vector<8x128xf32>
    %cst_16 = arith.constant dense<0.000000e+00> : vector<8xf32>
    %19 = vector.multi_reduction <add>, %18, %cst_16 [1] : vector<8x128xf32> to vector<8xf32>
    %20 = vector.shape_cast %19 : vector<8xf32> to vector<8x1xf32>
    %21 = vector.broadcast %16 : vector<1x1xf32> to vector<8x1xf32>
    %22 = arith.addf %20, %21 : vector<8x1xf32>
    %cst_17 = arith.constant 0.000000e+00 : f32
    %23 = vector.broadcast %cst_17 : f32 to vector<8x1xf32>
    %24 = arith.subf %23, %22 : vector<8x1xf32>
    %25 = math.exp %24 : vector<8x1xf32>
    %cst_18 = arith.constant 1.000000e+00 : f32
    %26 = vector.broadcast %cst_18 : f32 to vector<8x1xf32>
    %27 = arith.addf %26, %25 : vector<8x1xf32>
    %28 = tpu.reciprocal %27 {approx = true} : vector<8x1xf32> -> vector<8x1xf32>
    %cst_19 = arith.constant 0.000000e+00 : f32
    %29 = vector.broadcast %cst_19 : f32 to vector<8x1xf32>
    %30 = arith.maximumf %28, %29 : vector<8x1xf32>
    %cst_20 = arith.constant 1.000000e+00 : f32
    %31 = vector.broadcast %cst_20 : f32 to vector<8x1xf32>
    %32 = arith.minimumf %30, %31 : vector<8x1xf32>
    %33 = vector.shape_cast %32 : vector<8x1xf32> to vector<8x1xf32>
    %34 = vector.broadcast %33 : vector<8x1xf32> to vector<8x128xf32>
    %c0_21 = arith.constant 0 : index
    %c0_22 = arith.constant 0 : index
    %35 = vector.load %arg7[%c0_21, %c0_22] : memref<8x128xf32, #tpu.memory_space<vmem>>, vector<8x128xf32>
    tpu.vector_store %arg7[%c0_21, %c0_22], %34 {strides = array<i32>} : memref<8x128xf32, #tpu.memory_space<vmem>>, vector<8x128xf32>,
    return
  }
}

</mosaic_0001>

<llo_original>
// kernel: pytorch_nn_forward.1
$region0: #{pytorch_nn_forward.1}
  #allocation0 [shape = 'u32[]', space=smem, size = 0x4, offset = 0x4, fixed_abs, tag = 'smem constant byte address 0x4 - core index']
  #allocation1 [shape = 'u32[144,128]{1,0:T(1,128)}', space=vmem, size = 0x12000, scoped, tag = 'internal scratch']
  #allocation2 [shape = 'f32[1,1]{1,0:T(1,128)S(1)}', space=vmem, size = 0x200, scoped, tag = 'scoped memory for pytorch_nn_forward.1']
  %s0 = inlined_call_operand.vmem [shape: f32[8,128], index: 0, kind: input, shape index: {}]
  %s1 = inlined_call_operand.hbm [shape: f32[128,128], index: 1, kind: input, shape index: {}]
  %s2 = inlined_call_operand.vmem [shape: f32[1,128], index: 2, kind: input, shape index: {}]
  %s3 = inlined_call_operand.hbm [shape: f32[128,128], index: 3, kind: input, shape index: {}]
  %s4 = inlined_call_operand.vmem [shape: f32[1,128], index: 4, kind: input, shape index: {}]
  %s5 = inlined_call_operand.vmem [shape: f32[1,128], index: 5, kind: input, shape index: {}]
  %s6 = inlined_call_operand.<no memory space> [shape: f32[1,1], index: 6, kind: input, shape index: {}]
  %s7 = inlined_call_operand.vmem [shape: f32[8,128], index: 7, kind: output, shape index: {}]
  %s8 = sld [smem:[#allocation0]]
  $region46: #{pytorch_nn_forward.1} parent=0
    _
  %s10 = ssub.s32 1, %s8
  %s11 = scalar_select 0, %s10, %s8
  %v12 = vstv %s6
  %13 = vst [vmem:[#allocation2] sm:$0x1] %v12
  $region1: #{pytorch_nn_forward.1} parent=0
    #allocation3 [shape = 'u8[65536]{0}', space=vmem, size = 0x10000, scoped, tag = 'input window, operand 1, single buffered']
    #allocation4 [shape = 's32[1]{0}', space=sflag, size = 0x4, scoped, tag = 'scoped memory for pytorch_nn_forward.1']
    #allocation5 [shape = 'u8[65536]{0}', space=vmem, size = 0x10000, scoped, tag = 'input window, operand 3, single buffered']
    #allocation6 [shape = 's32[1]{0}', space=sflag, size = 0x4, scoped, tag = 'scoped memory for pytorch_nn_forward.1']
    %14 = vsyncpa [#allocation4], 0
    %15 = vsyncpa [#allocation6], 0
    // Predicated region
    $region2: #{pytorch_nn_forward.1} parent=1 // pred_check
      _
    $region3: #{pytorch_nn_forward.1} parent=1 // pred_check_branch
      %17 = sbr.rel (0) target = $region5
    $region4: #{pytorch_nn_forward.1} parent=1 // pred_region
      _
    $region5: #{pytorch_nn_forward.1} parent=1 // pred_fallthru
      _
    // Predicated region
    $region6: #{pytorch_nn_forward.1} parent=1 // pred_check
      _
    $region7: #{pytorch_nn_forward.1} parent=1 // pred_check_branch
      %19 = sbr.rel (0) target = $region9
    $region8: #{pytorch_nn_forward.1} parent=1 // pred_region
      %s21 = ssub.s32 2048, 2048
      %22 = vsyncadd [#allocation4], %s21
      %s23 = sshll.u32 [#allocation3], 4
      %s24 = int_to_ptr.vmem [resolvable:$true] %s23
      %29 = dma.hbm_to_vmem [thread:$0]  %s1, 2048, %s24, [#allocation4], 128, 128, 8
    $region9: #{pytorch_nn_forward.1} parent=1 // pred_fallthru
      _
    // Predicated region
    $region10: #{pytorch_nn_forward.1} parent=1 // pred_check
      _
    $region11: #{pytorch_nn_forward.1} parent=1 // pred_check_branch
      %31 = sbr.rel (0) target = $region13
    $region12: #{pytorch_nn_forward.1} parent=1 // pred_region
      _
    $region13: #{pytorch_nn_forward.1} parent=1 // pred_fallthru
      _
    // Predicated region
    $region14: #{pytorch_nn_forward.1} parent=1 // pred_check
      _
    $region15: #{pytorch_nn_forward.1} parent=1 // pred_check_branch
      %33 = sbr.rel (0) target = $region17
    $region16: #{pytorch_nn_forward.1} parent=1 // pred_region
      %s35 = ssub.s32 2048, 2048
      %36 = vsyncadd [#allocation6], %s35
      %s37 = sshll.u32 [#allocation5], 4
      %s38 = int_to_ptr.vmem [resolvable:$true] %s37
      %43 = dma.hbm_to_vmem [thread:$0]  %s3, 2048, %s38, [#allocation6], 128, 128, 8
    $region17: #{pytorch_nn_forward.1} parent=1 // pred_fallthru
      _
    // Predicated region
    $region18: #{pytorch_nn_forward.1} parent=1 // pred_check
      _
    $region19: #{pytorch_nn_forward.1} parent=1 // pred_check_branch
      %45 = sbr.rel (0) target = $region21
    $region20: #{pytorch_nn_forward.1} parent=1 // pred_region
      _
    $region21: #{pytorch_nn_forward.1} parent=1 // pred_fallthru
      _
    // Predicated region
    $region22: #{pytorch_nn_forward.1} parent=1 // pred_check
      _
    $region23: #{pytorch_nn_forward.1} parent=1 // pred_check_branch
      %47 = sbr.rel (0) target = $region25
    $region24: #{pytorch_nn_forward.1} parent=1 // pred_region
      _
    $region25: #{pytorch_nn_forward.1} parent=1 // pred_fallthru
      _
    // Predicated region
    $region26: #{pytorch_nn_forward.1} parent=1 // pred_check
      _
    $region27: #{pytorch_nn_forward.1} parent=1 // pred_check_branch
      %49 = sbr.rel (0) target = $region29
    $region28: #{pytorch_nn_forward.1} parent=1 // pred_region
      _
    $region29: #{pytorch_nn_forward.1} parent=1 // pred_fallthru
      _
    // Predicated region
    $region30: #{pytorch_nn_forward.1} parent=1 // pred_check
      _
    $region31: #{pytorch_nn_forward.1} parent=1 // pred_check_branch
      %51 = sbr.rel (0) target = $region33
    $region32: #{pytorch_nn_forward.1} parent=1 // pred_region
      %52 = dma.done [#allocation4], 2048
    $region33: #{pytorch_nn_forward.1} parent=1 // pred_fallthru
      _
    // Predicated region
    $region34: #{pytorch_nn_forward.1} parent=1 // pred_check
      _
    $region35: #{pytorch_nn_forward.1} parent=1 // pred_check_branch
      %54 = sbr.rel (0) target = $region37
    $region36: #{pytorch_nn_forward.1} parent=1 // pred_region
      %55 = dma.done [#allocation6], 2048
    $region37: #{pytorch_nn_forward.1} parent=1 // pred_fallthru
      _
    %v56 = vld [vmem:[%s0] sm:$0xff]
    %v57 = vld [vmem:[#allocation3] sm:$0xff]
    %v58 = vld [vmem:[#allocation3 + $0x8] sm:$0xff]
    %v59 = vld [vmem:[#allocation3 + $0x10] sm:$0xff]
    %v60 = vld [vmem:[#allocation3 + $0x18] sm:$0xff]
    %v61 = vld [vmem:[#allocation3 + $0x20] sm:$0xff]
    %v62 = vld [vmem:[#allocation3 + $0x28] sm:$0xff]
    %v63 = vld [vmem:[#allocation3 + $0x30] sm:$0xff]
    %v64 = vld [vmem:[#allocation3 + $0x38] sm:$0xff]
    %v65 = vld [vmem:[#allocation3 + $0x40] sm:$0xff]
    %v66 = vld [vmem:[#allocation3 + $0x48] sm:$0xff]
    %v67 = vld [vmem:[#allocation3 + $0x50] sm:$0xff]
    %v68 = vld [vmem:[#allocation3 + $0x58] sm:$0xff]
    %v69 = vld [vmem:[#allocation3 + $0x60] sm:$0xff]
    %v70 = vld [vmem:[#allocation3 + $0x68] sm:$0xff]
    %v71 = vld [vmem:[#allocation3 + $0x70] sm:$0xff]
    %v72 = vld [vmem:[#allocation3 + $0x78] sm:$0xff]
    %v73 = vld [vmem:[%s2] sm:$0x1]
    %v75 = vlaneseq
    %v76 = vshrl.u32 %v75, 7
    %v77 = vsub.s32 0, %v76
    %v78 = vrot.slane %v73, %v77
    %80 = vmatprep.subr.mxu0 0.0
    %81 = vmatpush1.msra.mxu0 %v57
    %82 = vmatprep.subr.mxu0 0.0
    %83 = vmatpush1.msra.mxu0 %v58
    %84 = vmatprep.subr.mxu0 0.0
    %85 = vmatpush1.msra.mxu0 %v59
    %86 = vmatprep.subr.mxu0 0.0
    %87 = vmatpush1.msra.mxu0 %v60
    %88 = vmatprep.subr.mxu0 0.0
    %89 = vmatpush1.msra.mxu0 %v61
    %90 = vmatprep.subr.mxu0 0.0
    %91 = vmatpush1.msra.mxu0 %v62
    %92 = vmatprep.subr.mxu0 0.0
    %93 = vmatpush1.msra.mxu0 %v63
    %94 = vmatprep.subr.mxu0 0.0
    %95 = vmatpush1.msra.mxu0 %v64
    %96 = vmatprep.subr.mxu0 0.0
    %97 = vmatpush1.msra.mxu0 %v65
    %98 = vmatprep.subr.mxu0 0.0
    %99 = vmatpush1.msra.mxu0 %v66
    %100 = vmatprep.subr.mxu0 0.0
    %101 = vmatpush1.msra.mxu0 %v67
    %102 = vmatprep.subr.mxu0 0.0
    %103 = vmatpush1.msra.mxu0 %v68
    %104 = vmatprep.subr.mxu0 0.0
    %105 = vmatpush1.msra.mxu0 %v69
    %106 = vmatprep.subr.mxu0 0.0
    %107 = vmatpush1.msra.mxu0 %v70
    %108 = vmatprep.subr.mxu0 0.0
    %109 = vmatpush1.msra.mxu0 %v71
    %110 = vmatprep.subr.mxu0 0.0
    %111 = vmatpush1.msra.mxu0 %v72
    %112 = vmatprep.subr.mxu0 0.0
    %113 = vmatpush1.msra.mxu0 0.0
    %114 = vmatprep.subr.mxu0 0.0
    %115 = vmatpush1.msra.mxu0 0.0
    %116 = vmatprep.subr.mxu0 0.0
    %117 = vmatpush1.msra.mxu0 0.0
    %118 = vmatprep.subr.mxu0 0.0
    %119 = vmatpush1.msra.mxu0 0.0
    %120 = vmatprep.subr.mxu0 0.0
    %121 = vmatpush1.msra.mxu0 0.0
    %122 = vmatprep.subr.mxu0 0.0
    %123 = vmatpush1.msra.mxu0 0.0
    %124 = vmatprep.subr.mxu0 0.0
    %125 = vmatpush1.msra.mxu0 0.0
    %126 = vmatprep.subr.mxu0 0.0
    %127 = vmatpush1.msra.mxu0 0.0
    %128 = vmatprep.subr.mxu0 0.0
    %129 = vmatpush1.msra.mxu0 0.0
    %130 = vmatprep.subr.mxu0 0.0
    %131 = vmatpush1.msra.mxu0 0.0
    %132 = vmatprep.subr.mxu0 0.0
    %133 = vmatpush1.msra.mxu0 0.0
    %134 = vmatprep.subr.mxu0 0.0
    %135 = vmatpush1.msra.mxu0 0.0
    %136 = vmatprep.subr.mxu0 0.0
    %137 = vmatpush1.msra.mxu0 0.0
    %138 = vmatprep.subr.mxu0 0.0
    %139 = vmatpush1.msra.mxu0 0.0
    %140 = vmatprep.subr.mxu0 0.0
    %141 = vmatpush1.msra.mxu0 0.0
    %142 = vmatprep.subr.mxu0 0.0
    %143 = vmatpush1.msra.mxu0 0.0
    %144 = vmatprep.mubr.f32.mxu0 0.0
    %145 = vmatmul.mubr.f32.gmra.mrb[0].mxu0 %v56
    %v146 = vpop.f32.mrb[0].mxu0
    %v147 = vadd.f32 %v78, %v146
    %v148 = vpop.f32.mrb[0].mxu0
    %149 = vdwg.mxu0
    %v150 = vmax.f32 %v147, 0.0
    %v151 = vld [vmem:[#allocation5] sm:$0xff]
    %v152 = vld [vmem:[#allocation5 + $0x8] sm:$0xff]
    %v153 = vld [vmem:[#allocation5 + $0x10] sm:$0xff]
    %v154 = vld [vmem:[#allocation5 + $0x18] sm:$0xff]
    %v155 = vld [vmem:[#allocation5 + $0x20] sm:$0xff]
    %v156 = vld [vmem:[#allocation5 + $0x28] sm:$0xff]
    %v157 = vld [vmem:[#allocation5 + $0x30] sm:$0xff]
    %v158 = vld [vmem:[#allocation5 + $0x38] sm:$0xff]
    %v159 = vld [vmem:[#allocation5 + $0x40] sm:$0xff]
    %v160 = vld [vmem:[#allocation5 + $0x48] sm:$0xff]
    %v161 = vld [vmem:[#allocation5 + $0x50] sm:$0xff]
    %v162 = vld [vmem:[#allocation5 + $0x58] sm:$0xff]
    %v163 = vld [vmem:[#allocation5 + $0x60] sm:$0xff]
    %v164 = vld [vmem:[#allocation5 + $0x68] sm:$0xff]
    %v165 = vld [vmem:[#allocation5 + $0x70] sm:$0xff]
    %v166 = vld [vmem:[#allocation5 + $0x78] sm:$0xff]
    %v167 = vld [vmem:[%s4] sm:$0x1]
    %v169 = vlaneseq
    %v170 = vshrl.u32 %v169, 7
    %v171 = vsub.s32 0, %v170
    %v172 = vrot.slane %v167, %v171
    %174 = vmatprep.subr.mxu0 0.0
    %175 = vmatpush1.msra.mxu0 %v151
    %176 = vmatprep.subr.mxu0 0.0
    %177 = vmatpush1.msra.mxu0 %v152
    %178 = vmatprep.subr.mxu0 0.0
    %179 = vmatpush1.msra.mxu0 %v153
    %180 = vmatprep.subr.mxu0 0.0
    %181 = vmatpush1.msra.mxu0 %v154
    %182 = vmatprep.subr.mxu0 0.0
    %183 = vmatpush1.msra.mxu0 %v155
    %184 = vmatprep.subr.mxu0 0.0
    %185 = vmatpush1.msra.mxu0 %v156
    %186 = vmatprep.subr.mxu0 0.0
    %187 = vmatpush1.msra.mxu0 %v157
    %188 = vmatprep.subr.mxu0 0.0
    %189 = vmatpush1.msra.mxu0 %v158
    %190 = vmatprep.subr.mxu0 0.0
    %191 = vmatpush1.msra.mxu0 %v159
    %192 = vmatprep.subr.mxu0 0.0
    %193 = vmatpush1.msra.mxu0 %v160
    %194 = vmatprep.subr.mxu0 0.0
    %195 = vmatpush1.msra.mxu0 %v161
    %196 = vmatprep.subr.mxu0 0.0
    %197 = vmatpush1.msra.mxu0 %v162
    %198 = vmatprep.subr.mxu0 0.0
    %199 = vmatpush1.msra.mxu0 %v163
    %200 = vmatprep.subr.mxu0 0.0
    %201 = vmatpush1.msra.mxu0 %v164
    %202 = vmatprep.subr.mxu0 0.0
    %203 = vmatpush1.msra.mxu0 %v165
    %204 = vmatprep.subr.mxu0 0.0
    %205 = vmatpush1.msra.mxu0 %v166
    %206 = vmatprep.subr.mxu0 0.0
    %207 = vmatpush1.msra.mxu0 0.0
    %208 = vmatprep.subr.mxu0 0.0
    %209 = vmatpush1.msra.mxu0 0.0
    %210 = vmatprep.subr.mxu0 0.0
    %211 = vmatpush1.msra.mxu0 0.0
    %212 = vmatprep.subr.mxu0 0.0
    %213 = vmatpush1.msra.mxu0 0.0
    %214 = vmatprep.subr.mxu0 0.0
    %215 = vmatpush1.msra.mxu0 0.0
    %216 = vmatprep.subr.mxu0 0.0
    %217 = vmatpush1.msra.mxu0 0.0
    %218 = vmatprep.subr.mxu0 0.0
    %219 = vmatpush1.msra.mxu0 0.0
    %220 = vmatprep.subr.mxu0 0.0
    %221 = vmatpush1.msra.mxu0 0.0
    %222 = vmatprep.subr.mxu0 0.0
    %223 = vmatpush1.msra.mxu0 0.0
    %224 = vmatprep.subr.mxu0 0.0
    %225 = vmatpush1.msra.mxu0 0.0
    %226 = vmatprep.subr.mxu0 0.0
    %227 = vmatpush1.msra.mxu0 0.0
    %228 = vmatprep.subr.mxu0 0.0
    %229 = vmatpush1.msra.mxu0 0.0
    %230 = vmatprep.subr.mxu0 0.0
    %231 = vmatpush1.msra.mxu0 0.0
    %232 = vmatprep.subr.mxu0 0.0
    %233 = vmatpush1.msra.mxu0 0.0
    %234 = vmatprep.subr.mxu0 0.0
    %235 = vmatpush1.msra.mxu0 0.0
    %236 = vmatprep.subr.mxu0 0.0
    %237 = vmatpush1.msra.mxu0 0.0
    %238 = vmatprep.mubr.f32.mxu0 0.0
    %239 = vmatmul.mubr.f32.gmra.mrb[0].mxu0 %v150
    %v240 = vpop.f32.mrb[0].mxu0
    %v241 = vadd.f32 %v172, %v240
    %v242 = vpop.f32.mrb[0].mxu0
    %243 = vdwg.mxu0
    %v244 = vmax.f32 %v241, 0.0
    %v245 = vld [vmem:[%s5] sm:$0x1]
    %v246 = vld [vmem:[#allocation2] sm:$0x1]
    %v248 = vlaneseq
    %v249 = vshrl.u32 %v248, 7
    %v250 = vsub.s32 0, %v249
    %v251 = vrot.slane %v245, %v250
    %v253 = vmul.f32 %v244, %v251
    %254 = vadd.xlane.f32.xlu0 %v253
    %v255 = vpop.xlane.xlu0 %254
    %v257 = vlaneseq
    %v258 = vshrl.u32 %v257, 7
    %v259 = vsub.s32 0, %v258
    %v260 = vrot.slane %v246, %v259
    %v262 = vadd.f32 %v255, %v260
    %v263 = vsub.f32 0.0, %v262
    %v264 = vmul.f32 %v263, 1.442695
    %v265 = vpow.pop %v264
    %v266 = vadd.f32 %v265, 1.0
    %v267 = vrcp.pop %v266
    %v268 = vmax.f32 %v267, 0.0
    %v269 = vmin.f32 %v268, 1.0
    %271 = vset.pattern.permute.xlu0 0
    %272 = vperm.xlu0 %271, %v269
    %v273 = vpop.permute.xlu0 %272
    %275 = vst [vmem:[%s7] sm:$0xff] %v273
    // Predicated region
    $region38: #{pytorch_nn_forward.1} parent=1 // pred_check
      _
    $region39: #{pytorch_nn_forward.1} parent=1 // pred_check_branch
      %277 = sbr.rel (0) target = $region41
    $region40: #{pytorch_nn_forward.1} parent=1 // pred_region
      _
    $region41: #{pytorch_nn_forward.1} parent=1 // pred_fallthru
      _
    // Predicated region
    $region42: #{pytorch_nn_forward.1} parent=1 // pred_check
      _
    $region43: #{pytorch_nn_forward.1} parent=1 // pred_check_branch
      %279 = sbr.rel (0) target = $region45
    $region44: #{pytorch_nn_forward.1} parent=1 // pred_region
      _
    $region45: #{pytorch_nn_forward.1} parent=1 // pred_fallthru
      _
    %280 = vsyncpa [#allocation4], 1
    %281 = vsyncpa [#allocation6], 1

</llo_original>
